<compile_context>
chip_gen: v5e
topology: v5e:2x2
jax: 0.10.0
libtpu: 0.0.40
codegen_flags: <defaults>
</compile_context>

<pallas_src>
import functools

import jax
import jax.numpy as jnp
from jax import lax
from jax.experimental import pallas as pl
from jax.experimental.pallas import tpu as pltpu


def _round_up(x, m):
    return ((x + m - 1) // m) * m


def _ctba_kernel(x_ref, w_ref, shift_ref, o_ref, *, tile_h, w_px):
    # x_ref:     (Cin, tile_h*w_px)  f32  native-layout pixel tile (lanes = pixels)
    # w_ref:     (Cin, KW*Cp)        bf16 weight slice for this kh (BN scale folded)
    # shift_ref: (1,   KW*Cp)        f32  folded BN shift (beta - mean*scale, per kw)
    # o_ref:     (tile_h, w_px, KW*Cp) output tile; rows = image rows, cols = (w,kw,co)
    x = x_ref[...].astype(w_ref.dtype)            # in-kernel cast: f32 HBM read once
    # Transposed-LHS matmul: contract Cin (dim 0 of both operands) -> (pixels, KW*Cp)
    acc = lax.dot_general(x, w_ref[...], (((0,), (0,)), ((), ())),
                          preferred_element_type=jnp.float32)
    y = acc + shift_ref[...]                      # BN shift (broadcast over pixels)
    y = y * pl.reciprocal(1.0 + jnp.exp(-y), approx=True)   # SiLU (act='silu')
    # Split pixel rows back into (image-row, w). w_px % 8 == 0 keeps this a
    # layout-trivial shape cast (minor dim unchanged, sublane-aligned split).
    o_ref[...] = y.reshape(tile_h, w_px, y.shape[-1]).astype(o_ref.dtype)


def _pick_tile_h(H, Wp, Cin, KWCp, budget_bytes):
    """Largest tile_h that divides H, keeps the x block lane-aligned, and fits a
    double-buffered VMEM budget (physical (sublane, lane) padding included)."""
    def buffered_bytes(th):
        hw = th * Wp
        x_blk = _round_up(Cin, 8) * _round_up(hw, 128) * 4          # f32 input tile
        o_blk = th * _round_up(Wp, 16) * _round_up(KWCp, 128) * 2   # bf16 output tile
        w_blk = _round_up(Cin, 16) * _round_up(KWCp, 128) * 2       # bf16 weight slice
        s_blk = 8 * _round_up(KWCp, 128) * 4                        # f32 shift row
        return 2 * (x_blk + o_blk + w_blk + s_blk)                  # double-buffered
    divisors = [d for d in range(1, H + 1) if H % d == 0]
    # x block minor dim (tile_h * Wp) must be a multiple of 128 or the full H*Wp.
    cands = [d for d in divisors if (d * Wp) % 128 == 0] or [H]
    tile_h = cands[0]
    for d in cands:                       # ascending -> keep the largest that fits
        if buffered_bytes(d) <= budget_bytes:
            tile_h = d
    return tile_h, buffered_bytes(tile_h)


@functools.partial(jax.jit, static_argnames=("compute_dtype", "out_dtype"))
def ctba_forward(x, weight, gamma, beta, running_mean, running_var, eps=1e-5,
                 *, compute_dtype=jnp.bfloat16, out_dtype=jnp.bfloat16):
    """CTBA forward: ConvTranspose2d(k=2, s=2, p=0, bias=False) + BN(eval) + SiLU.

    x:      (N, Cin, H, W)      NCHW, matching the PyTorch module.
    weight: (Cin, Cout, 2, 2)   PyTorch ConvTranspose2d weight layout.
    returns (N, Cout, 2H, 2W) in `out_dtype`.
    """
    N, Cin, H, W = x.shape
    _, Cout, KH, KW = weight.shape
    assert (KH, KW) == (2, 2)

    # --- padding for friendly layouts -------------------------------------
    Wp = _round_up(W, 8)                       # sublane-aligned in-kernel row split
    if Wp != W:
        x = jnp.pad(x, ((0, 0), (0, 0), (0, 0), (0, Wp - W)))
    Cp = _round_up(Cout, 64)                   # KW*Cp % 128 == 0 -> lane-dense stores
    KWCp = KW * Cp

    # --- BN(eval) folding ---------------------------------------------------
    scale_c = gamma / jnp.sqrt(running_var + eps)            # [Cout]
    shift_c = beta - running_mean * scale_c                   # [Cout]
    if Cp != Cout:
        scale_pad = jnp.pad(scale_c, (0, Cp - Cout))
        shift_pad = jnp.pad(shift_c, (0, Cp - Cout))
    else:
        scale_pad, shift_pad = scale_c, shift_c

    # weight (Cin, Cout, KH, KW) -> (KH, Cin, KW, Cp) with BN scale folded in.
    w_t = jnp.transpose(weight, (2, 0, 3, 1))                 # (KH, Cin, KW, Cout)
    if Cp != Cout:
        w_t = jnp.pad(w_t, ((0, 0), (0, 0), (0, 0), (0, Cp - Cout)))
    w_mat = (w_t * scale_pad).reshape(KH, Cin, KWCp).astype(compute_dtype)
    shift = jnp.tile(shift_pad, KW).reshape(1, KWCp).astype(jnp.float32)

    # --- zero-copy native-layout view of x ----------------------------------
    x3 = x.reshape(N, Cin, H * Wp)             # free reshape (trailing-dim merge)

    # --- tiling / VMEM budget (generation dependent) -------------------------
    try:
        vmem_cap = int(pltpu.get_tpu_info().vmem_capacity_bytes)
    except Exception:
        vmem_cap = 64 * 1024 * 1024            # conservative default (v7x per-TC)
    tile_h, vmem_needed = _pick_tile_h(H, Wp, Cin, KWCp, budget_bytes=vmem_cap // 2)
    tile_hw = tile_h * Wp
    vmem_limit = min(int(0.9 * vmem_cap), max(2 * vmem_needed, 32 * 1024 * 1024))
    vmem_limit = max(vmem_limit, vmem_needed)

    grid = (N, H // tile_h, KH)                # kh innermost -> x tile DMA reused

    out_bytes = N * H * KH * Wp * KWCp * jnp.dtype(out_dtype).itemsize
    cost = pl.CostEstimate(
        flops=2 * N * H * Wp * Cin * KH * KWCp,
        transcendentals=N * H * KH * Wp * KWCp,
        bytes_accessed=int(x3.size * 4 + w_mat.size * 2 + shift.size * 4 + out_bytes),
    )

    y5 = pl.pallas_call(
        functools.partial(_ctba_kernel, tile_h=tile_h, w_px=Wp),
        out_shape=jax.ShapeDtypeStruct((N, H, KH, Wp, KWCp), out_dtype),
        grid_spec=pltpu.PrefetchScalarGridSpec(
            num_scalar_prefetch=0,
            grid=grid,
            in_specs=[
                # x: (N, Cin, H*Wp); same block for both kh steps (DMA reused).
                pl.BlockSpec((None, Cin, tile_hw), lambda n, ht, kh: (n, 0, ht)),
                # weight: (KH, Cin, KW*Cp), one kh slice per step (tiny).
                pl.BlockSpec((None, Cin, KWCp), lambda n, ht, kh: (kh, 0, 0)),
                # shift: constant row.
                pl.BlockSpec((1, KWCp), lambda n, ht, kh: (0, 0)),
            ],
            # output (N, H, KH, Wp, KW*Cp): reshapes for free to NHWC.
            out_specs=pl.BlockSpec((None, tile_h, None, Wp, KWCp),
                                   lambda n, ht, kh: (n, ht, kh, 0, 0)),
        ),
        compiler_params=pltpu.CompilerParams(
            dimension_semantics=("parallel", "parallel", "arbitrary"),
            vmem_limit_bytes=int(vmem_limit)),
        cost_estimate=cost,
    )(x3, w_mat, shift)

    # --- free reshapes to NHWC, then ONE standard NHWC->NCHW transpose -------
    y = y5.reshape(N, H * KH, Wp * KW, Cp)     # (n, 2h+kh, 2w+kw, co), zero-copy
    y = y[:, :, : W * KW, :Cout]               # drop W / Cout padding (if any)
    y = jnp.transpose(y, (0, 3, 1, 2))         # NHWC -> NCHW (module convention)
    return y


def ctba_reference(x, weight, gamma, beta, running_mean, running_var, eps=1e-5):
    """Pure-JAX f32 reference (same math, no Pallas) for a sanity check."""
    N, Cin, H, W = x.shape
    _, Cout, KH, KW = weight.shape
    y = jnp.einsum("nchw,cokl->nohwkl", x, weight)            # (N,Cout,H,W,2,2)
    y = jnp.transpose(y, (0, 1, 2, 4, 3, 5)).reshape(N, Cout, H * KH, W * KW)
    scale = gamma / jnp.sqrt(running_var + eps)
    shift = beta - running_mean * scale
    y = y * scale[None, :, None, None] + shift[None, :, None, None]
    return y * jax.nn.sigmoid(y)


if __name__ == "__main__":
    key = jax.random.PRNGKey(0)
    k_x, k_w, k_g, k_b, k_m, k_v = jax.random.split(key, 6)

    N, Cin, Cout, H, W = 2, 16, 32, 16, 16

    x = jax.random.normal(k_x, (N, Cin, H, W), dtype=jnp.float32)
    # ConvTranspose2d weight layout: (in_channels, out_channels, kH, kW)
    weight = jax.random.normal(k_w, (Cin, Cout, 2, 2), dtype=jnp.float32) * 0.1
    gamma = 1.0 + 0.1 * jax.random.normal(k_g, (Cout,), dtype=jnp.float32)
    beta = 0.1 * jax.random.normal(k_b, (Cout,), dtype=jnp.float32)
    running_mean = 0.1 * jax.random.normal(k_m, (Cout,), dtype=jnp.float32)
    running_var = jnp.abs(
        1.0 + 0.1 * jax.random.normal(k_v, (Cout,), dtype=jnp.float32))

    out = ctba_forward(x, weight, gamma, beta, running_mean, running_var)
    out = jax.block_until_ready(out)

    ref = ctba_reference(x, weight, gamma, beta, running_mean, running_var)
    assert out.shape == (N, Cout, 2 * H, 2 * W), out.shape
    # bf16 compute / output -> loosened tolerance vs. the f32 reference.
    err = float(jnp.max(jnp.abs(out.astype(jnp.float32) - ref)))
    assert jnp.allclose(out.astype(jnp.float32), ref, atol=5e-2, rtol=5e-2), err

    print("KERNEL_OK")
</pallas_src>

<mosaic_0001>
module attributes {stable_mosaic.version = 11 : i64} {
  func.func @_ctba_kernel(%arg0: i32, %arg1: i32, %arg2: i32, %arg3: memref<1x16x256xf32, #tpu.memory_space<vmem>>, %arg4: memref<1x16x128xbf16, #tpu.memory_space<vmem>>, %arg5: memref<1x128xf32, #tpu.memory_space<vmem>>, %arg6: memref<1x16x1x16x128xbf16, #tpu.memory_space<vmem>>) attributes {dimension_semantics = [#tpu.dimension_semantics<parallel>, #tpu.dimension_semantics<parallel>, #tpu.dimension_semantics<arbitrary>], iteration_bounds = array<i64: 2, 1, 2>, scalar_prefetch = 0 : i64, scratch_operands = 0 : i64, tpu.core_type = #tpu.core_type<tc>, window_params = [{transform_indices = @transform_0, window_bounds = array<i64: 1, 16, 256>}, {transform_indices = @transform_1, window_bounds = array<i64: 1, 16, 128>}, {pipeline_mode = #tpu.pipeline_mode<synchronous>, transform_indices = @transform_2, window_bounds = array<i64: 1, 128>}, {transform_indices = @transform_3, window_bounds = array<i64: 1, 16, 1, 16, 128>}]} {
    %c0 = arith.constant 0 : index
    %c0_0 = arith.constant 0 : index
    %c0_1 = arith.constant 0 : index
    %0 = vector.load %arg3[%c0, %c0_0, %c0_1] : memref<1x16x256xf32, #tpu.memory_space<vmem>>, vector<1x16x256xf32>
    %1 = vector.shape_cast %0 : vector<1x16x256xf32> to vector<16x256xf32>
    %2 = arith.truncf %1 : vector<16x256xf32> to vector<16x256xbf16>
    %c0_2 = arith.constant 0 : index
    %c0_3 = arith.constant 0 : index
    %c0_4 = arith.constant 0 : index
    %3 = vector.load %arg4[%c0_2, %c0_3, %c0_4] : memref<1x16x128xbf16, #tpu.memory_space<vmem>>, vector<1x16x128xbf16>
    %4 = vector.shape_cast %3 : vector<1x16x128xbf16> to vector<16x128xbf16>
    %cst = arith.constant dense<0.000000e+00> : vector<256x128xf32>
    %5 = tpu.matmul %2, %4, %cst {dimension_numbers = #tpu.dot_dimension_numbers<[0], [0], [1], [1], [0, 1, 1, 1], [], []>} : vector<16x256xbf16>, vector<16x128xbf16>, vector<256x128xf32> -> vector<256x128xf32>
    %c0_5 = arith.constant 0 : index
    %c0_6 = arith.constant 0 : index
    %6 = vector.load %arg5[%c0_5, %c0_6] : memref<1x128xf32, #tpu.memory_space<vmem>>, vector<1x128xf32>
    %7 = vector.broadcast %6 : vector<1x128xf32> to vector<256x128xf32>
    %8 = arith.addf %5, %7 : vector<256x128xf32>
    %cst_7 = arith.constant 0.000000e+00 : f32
    %9 = vector.broadcast %cst_7 : f32 to vector<256x128xf32>
    %10 = arith.subf %9, %8 : vector<256x128xf32>
    %11 = math.exp %10 : vector<256x128xf32>
    %cst_8 = arith.constant 1.000000e+00 : f32
    %12 = vector.broadcast %cst_8 : f32 to vector<256x128xf32>
    %13 = arith.addf %12, %11 : vector<256x128xf32>
    %14 = tpu.reciprocal %13 {approx = true} : vector<256x128xf32> -> vector<256x128xf32>
    %15 = arith.mulf %8, %14 : vector<256x128xf32>
    %16 = vector.shape_cast %15 : vector<256x128xf32> to vector<16x16x128xf32>
    %17 = arith.truncf %16 : vector<16x16x128xf32> to vector<16x16x128xbf16>
    %c0_9 = arith.constant 0 : index
    %c0_10 = arith.constant 0 : index
    %c0_11 = arith.constant 0 : index
    %c0_12 = arith.constant 0 : index
    %c0_13 = arith.constant 0 : index
    %18 = vector.load %arg6[%c0_9, %c0_10, %c0_11, %c0_12, %c0_13] : memref<1x16x1x16x128xbf16, #tpu.memory_space<vmem>>, vector<1x16x1x16x128xbf16>
    %19 = vector.shape_cast %18 : vector<1x16x1x16x128xbf16> to vector<16x16x128xbf16>
    %20 = vector.shape_cast %17 : vector<16x16x128xbf16> to vector<1x16x1x16x128xbf16>
    tpu.vector_store %arg6[%c0_9, %c0_10, %c0_11, %c0_12, %c0_13], %20 {strides = array<i32>} : memref<1x16x1x16x128xbf16, #tpu.memory_space<vmem>>, vector<1x16x1x16x128xbf16>,
    return
  }
  func.func @transform_0(%arg0: i32, %arg1: i32, %arg2: i32) -> (i32, i32, i32) {
    %c0_i32 = arith.constant 0 : i32
    %c0_i32_0 = arith.constant 0 : i32
    return %arg0, %c0_i32, %arg1 : i32, i32, i32
  }
  func.func @transform_1(%arg0: i32, %arg1: i32, %arg2: i32) -> (i32, i32, i32) {
    %c0_i32 = arith.constant 0 : i32
    %c0_i32_0 = arith.constant 0 : i32
    %c0_i32_1 = arith.constant 0 : i32
    return %arg2, %c0_i32, %c0_i32_0 : i32, i32, i32
  }
  func.func @transform_2(%arg0: i32, %arg1: i32, %arg2: i32) -> (i32, i32) {
    %c0_i32 = arith.constant 0 : i32
    %c0_i32_0 = arith.constant 0 : i32
    %c0_i32_1 = arith.constant 0 : i32
    return %c0_i32, %c0_i32_0 : i32, i32
  }
  func.func @transform_3(%arg0: i32, %arg1: i32, %arg2: i32) -> (i32, i32, i32, i32, i32) {
    %c0_i32 = arith.constant 0 : i32
    %c0_i32_0 = arith.constant 0 : i32
    %c0_i32_1 = arith.constant 0 : i32
    return %arg0, %arg1, %arg2, %c0_i32, %c0_i32_0 : i32, i32, i32, i32, i32
  }
}

</mosaic_0001>

<llo_original>
// kernel: tile.9
$region0: #{tile.9}
  %s0 = inlined_call_operand.vmem [shape: f32[2,64], index: 0, kind: input, shape index: {}]
  %s1 = inlined_call_operand.vmem [shape: f32[1,128], index: 1, kind: output, shape index: {}]
  $region1: #{tile.9} parent=0
    #allocation0 [shape = 'u8[4096]{0}', space=vmem, size = 0x1000, scoped, tag = 'scoped mem for output reshape']
    #allocation1 [shape = 'u8[4096]{0}', space=vmem, size = 0x1000, scoped, tag = 'scoped mem for input reshape']
    %s3 = ssub.s32 4, 1
    %v4 = vld [vmem:[%s0] sm:%s3]
    %5 = vst [vmem:[#allocation1] sm:%s3] %v4
    %v6 = vld [vmem:[#allocation1] sm:$0x1]
    %vm7 = vcmask 523264
    %8 = vst.msk [vmem:[#allocation0] sm:$0x1] %vm7, %v6
    %s9 = scalar_lea.vmem [#allocation1], 1
    %v10 = vld [vmem:[%s9] sm:$0x1]
    %11 = vrot.lane.b32.xlu0 %v10, 64
    %v12 = vpop.permute.xlu0 %11
    %vm13 = vcmask 1048064
    %14 = vst.msk [vmem:[#allocation0] sm:$0x1] %vm13, %v12
    %s16 = ssub.s32 2, 1
    %v17 = vld [vmem:[#allocation0] sm:%s16]
    %s19 = ssub.s32 2, 1
    %20 = vst [vmem:[%s1] sm:%s19] %v17

// kernel: tile.8
$region0: #{tile.8}
  #allocation0 [shape = 's32[1]{0}', space=sflag, size = 0x4, scoped, tag = 'scoped memory for tile.8']
  %s0 = inlined_call_operand.vmem [shape: f32[64], index: 0, kind: input, shape index: {}]
  %s1 = inlined_call_operand.vmem [shape: f32[2,64], index: 1, kind: output, shape index: {}]
  // Predicated region
  $region2: #{tile.8} parent=0 // pred_check
    _
  $region3: #{tile.8} parent=0 // pred_check_branch
    %3 = sbr.rel (0) target = $region5
  $region4: #{tile.8} parent=0 // pred_region
    _
  $region5: #{tile.8} parent=0 // pred_fallthru
    _
  %v4 = vld [vmem:[%s0] ss:$0 sm:$0xff]
  %5 = vst [vmem:[%s1] sm:$0x3] %v4

// kernel: ctba_forward.1
$region0: #{ctba_forward.1}
  #allocation0 [shape = 'u32[]', space=smem, size = 0x4, offset = 0x4, fixed_abs, tag = 'smem constant byte address 0x4 - core index']
  #allocation1 [shape = 'u32[72,128]{1,0:T(1,128)}', space=vmem, size = 0x9000, scoped, tag = 'internal scratch']
  %s0 = inlined_call_operand.vmem [shape: f32[2,16,256], index: 0, kind: input, shape index: {}]
  %s1 = inlined_call_operand.vmem [shape: bf16[2,16,128], index: 1, kind: input, shape index: {}]
  %s2 = inlined_call_operand.vmem [shape: f32[1,128], index: 2, kind: input, shape index: {}]
  %s3 = inlined_call_operand.vmem [shape: bf16[2,16,2,16,128], index: 3, kind: output, shape index: {}]
  %s4 = sld [smem:[#allocation0]]
  $region82: #{ctba_forward.1} parent=0
    _
  %s6 = ssub.s32 1, %s4
  %s7 = scalar_select 0, %s6, %s4
  $region1: #{ctba_forward.1} parent=0
    #allocation2 [shape = 'u8[131072]{0}', space=vmem, size = 0x20000, scoped, tag = 'output window, operand 0']
    loop: start=0, step=1, limit=6
    $region2: #{ctba_forward.1} parent=1 // loop_pre_header
      _
    $region3: #{ctba_forward.1} parent=1 // loop_header
      %s9 = sphi 0, %s13
      %p10 = scmp.ge.s32.totalorder %s9, 6
      %s16 = sphi 0, %s35
      %s17 = sphi 0, %s31
      %s18 = sphi 0, %s27
      %s19 = sphi 0, %s16
      %s20 = sphi 0, %s17
      %s21 = sphi 0, %s18
      %s22 = sphi 0, %s19
      %s23 = sphi 0, %s20
      %s24 = sphi 0, %s21
      %s40 = sphi 0, %s42
      %s43 = sphi 0, %s40
      %s44 = sphi 0, %s43
      %s60 = sphi 0, %s44
      %s66 = sphi 0, %s68
      %s69 = sphi 0, %s66
      %s70 = sphi 0, %s69
      %s86 = sphi 0, %s70
      %s90 = sphi 0, %s90
      %s92 = sphi 0, %s90
      %s93 = sphi 0, %s92
      %s107 = sphi 0, %s93
      %s117 = sphi 0, %s119
      %s120 = sphi 0, %s117
      %s121 = sphi 0, %s120
      %s137 = sphi 0, %s121
    $region4: #{ctba_forward.1} parent=1 // loop_header_branch
      %12 = sbr.rel (%p10) target = $region8
    $region5: #{ctba_forward.1} parent=1 // loop_body
      %s14 = ssub.s32 %s9, 1
      %s15 = ssub.s32 %s9, 2
      %s25 = sadd.s32 1, %s18
      %p26 = scmp.ge.s32.totalorder %s25, 2
      %s27 = scalar_select %p26, 0, %s25
      %s28 = sadd.s32 1, %s17
      %s29 = scalar_select %p26, %s28, %s17
      %p30 = scmp.ge.s32.totalorder %s29, 1
      %s31 = scalar_select %p30, 0, %s29
      %s32 = sadd.s32 1, %s16
      %s33 = scalar_select %p30, %s32, %s16
      %p34 = scmp.ge.s32.totalorder %s33, 2
      %s35 = scalar_select %p34, 0, %s33
      %s36 = ssub.s32 %s16, %s35
      %s37 = ssub.s32 %s17, %s31
      %s38 = sor.u32 %s36, %s37
      %p39 = scmp.eq.s32.totalorder %s38, 0
      %s41 = sadd.s32 %s40, 1
      %s42 = scalar_select %p39, %s40, %s41
      %p45 = pneg %p39
      %p46 = scmp.eq.s32.totalorder %s9, 3
      %p47 = por %p45, %p46
      %p48 = scmp.ne.s32.totalorder %s40, %s43
      %p49 = scmp.eq.s32.totalorder %s9, 0
      %p50 = por %p48, %p49
      %p51 = scmp.ne.s32.totalorder %s40, %s43
      %p52 = scmp.eq.s32.totalorder %s14, 3
      %p53 = por %p51, %p52
      %p54 = scmp.ne.s32.totalorder %s43, %s44
      %p55 = scmp.eq.s32.totalorder %s14, 0
      %p56 = por %p54, %p55
      %p57 = scmp.ne.s32.totalorder %s43, %s44
      %p58 = scmp.eq.s32.totalorder %s15, 3
      %p59 = por %p57, %p58
      %p61 = scmp.ne.s32.totalorder %s44, %s60
      %p62 = scmp.eq.s32.totalorder %s15, 0
      %p63 = por %p61, %p62
      %s64 = ssub.s32 %s18, %s27
      %p65 = scmp.eq.s32.totalorder %s64, 0
      %s67 = sadd.s32 %s66, 1
      %s68 = scalar_select %p65, %s66, %s67
      %p71 = pneg %p65
      %p72 = scmp.eq.s32.totalorder %s9, 3
      %p73 = por %p71, %p72
      %p74 = scmp.ne.s32.totalorder %s66, %s69
      %p75 = scmp.eq.s32.totalorder %s9, 0
      %p76 = por %p74, %p75
      %p77 = scmp.ne.s32.totalorder %s66, %s69
      %p78 = scmp.eq.s32.totalorder %s14, 3
      %p79 = por %p77, %p78
      %p80 = scmp.ne.s32.totalorder %s69, %s70
      %p81 = scmp.eq.s32.totalorder %s14, 0
      %p82 = por %p80, %p81
      %p83 = scmp.ne.s32.totalorder %s69, %s70
      %p84 = scmp.eq.s32.totalorder %s15, 3
      %p85 = por %p83, %p84
      %p87 = scmp.ne.s32.totalorder %s70, %s86
      %p88 = scmp.eq.s32.totalorder %s15, 0
      %p89 = por %p87, %p88
      %s91 = sadd.s32 %s90, 1
      %p94 = scmp.eq.s32.totalorder %s9, 3
      %p95 = scmp.ne.s32.totalorder %s90, %s92
      %p96 = scmp.eq.s32.totalorder %s9, 0
      %p97 = por %p95, %p96
      %p98 = scmp.ne.s32.totalorder %s90, %s92
      %p99 = scmp.eq.s32.totalorder %s14, 3
      %p100 = por %p98, %p99
      %p101 = scmp.ne.s32.totalorder %s92, %s93
      %p102 = scmp.eq.s32.totalorder %s14, 0
      %p103 = por %p101, %p102
      %p104 = scmp.ne.s32.totalorder %s92, %s93
      %p105 = scmp.eq.s32.totalorder %s15, 3
      %p106 = por %p104, %p105
      %p108 = scmp.ne.s32.totalorder %s93, %s107
      %p109 = scmp.eq.s32.totalorder %s15, 0
      %p110 = por %p108, %p109
      %s111 = ssub.s32 %s16, %s35
      %s112 = ssub.s32 %s17, %s31
      %s113 = sor.u32 %s111, %s112
      %s114 = ssub.s32 %s18, %s27
      %s115 = sor.u32 %s113, %s114
      %p116 = scmp.eq.s32.totalorder %s115, 0
      %s118 = sadd.s32 %s117, 1
      %s119 = scalar_select %p116, %s117, %s118
      %p122 = pneg %p116
      %p123 = scmp.eq.s32.totalorder %s9, 3
      %p124 = por %p122, %p123
      %p125 = scmp.ne.s32.totalorder %s117, %s120
      %p126 = scmp.eq.s32.totalorder %s9, 0
      %p127 = por %p125, %p126
      %p128 = scmp.ne.s32.totalorder %s117, %s120
      %p129 = scmp.eq.s32.totalorder %s14, 3
      %p130 = por %p128, %p129
      %p131 = scmp.ne.s32.totalorder %s120, %s121
      %p132 = scmp.eq.s32.totalorder %s14, 0
      %p133 = por %p131, %p132
      %p134 = scmp.ne.s32.totalorder %s120, %s121
      %p135 = scmp.eq.s32.totalorder %s15, 3
      %p136 = por %p134, %p135
      %p138 = scmp.ne.s32.totalorder %s121, %s137
      %p139 = scmp.eq.s32.totalorder %s15, 0
      %p140 = por %p138, %p139
      %p141 = scmp.le.s32.totalorder 1, %s9
      %p142 = scmp.lt.s32.totalorder %s9, 5
      %p143 = pnand %p141, %p142
      %p144 = pneg %p143
      // Predicated region
      $region9: #{ctba_forward.1} parent=5 // pred_check
        _
      $region10: #{ctba_forward.1} parent=5 // pred_check_branch
        %146 = sbr.rel (%p143) target = $region12
      $region11: #{ctba_forward.1} parent=5 // pred_region
        %s147 = ssub.s32 %s9, 1
        // Predicated region
        $region13: #{ctba_forward.1} parent=11 // pred_check
          %p148 = pneg %p103
        $region14: #{ctba_forward.1} parent=11 // pred_check_branch
          %150 = sbr.rel (%p148) target = $region16
        $region15: #{ctba_forward.1} parent=11 // pred_region
          _
        $region16: #{ctba_forward.1} parent=11 // pred_fallthru
          _
      $region12: #{ctba_forward.1} parent=5 // pred_fallthru
        _
      %p151 = scmp.lt.s32.totalorder %s9, 4
      // Predicated region
      $region17: #{ctba_forward.1} parent=5 // pred_check
        %p152 = pneg %p151
      $region18: #{ctba_forward.1} parent=5 // pred_check_branch
        %154 = sbr.rel (%p152) target = $region20
      $region19: #{ctba_forward.1} parent=5 // pred_region
        // Predicated region
        $region21: #{ctba_forward.1} parent=19 // pred_check
          %p155 = pneg %p50
        $region22: #{ctba_forward.1} parent=19 // pred_check_branch
          %157 = sbr.rel (%p155) target = $region24
        $region23: #{ctba_forward.1} parent=19 // pred_region
          %s158 = smul.u32 2, %s17
          %p159 = scmp.lt.s32.totalorder %s16, 1
          %s160 = scalar_select %p159, %s16, 1
          %p161 = scmp.lt.s32.totalorder %s158, 1
          %s162 = scalar_select %p161, %s158, 1
          %s163 = smul.addr %s160, 4
          %s164 = sadd.s32 %s162, %s163
          %s165 = smul.addr %s164, 8
          %s166 = scalar_lea.vmem %s0, %s165
          %s167 = smul.u32 2, %s17
        $region24: #{ctba_forward.1} parent=19 // pred_fallthru
          _
        // Predicated region
        $region25: #{ctba_forward.1} parent=19 // pred_check
          %p168 = pneg %p76
        $region26: #{ctba_forward.1} parent=19 // pred_check_branch
          %170 = sbr.rel (%p168) target = $region28
        $region27: #{ctba_forward.1} parent=19 // pred_region
          %p171 = scmp.lt.s32.totalorder %s18, 1
          %s172 = scalar_select %p171, %s18, 1
          %s173 = smul.addr %s172, 2
          %s174 = smul.addr %s173, 4
          %s175 = scalar_lea.vmem %s1, %s174
        $region28: #{ctba_forward.1} parent=19 // pred_fallthru
          _
      $region20: #{ctba_forward.1} parent=5 // pred_fallthru
        _
      %p176 = scmp.le.s32.totalorder 1, %s9
      %p177 = scmp.lt.s32.totalorder %s9, 5
      %p178 = pnand %p176, %p177
      %p179 = pneg %p178
      // Predicated region
      $region29: #{ctba_forward.1} parent=5 // pred_check
        _
      $region30: #{ctba_forward.1} parent=5 // pred_check_branch
        %181 = sbr.rel (%p178) target = $region32
      $region31: #{ctba_forward.1} parent=5 // pred_region
        %s182 = ssub.s32 %s9, 1
        %s183 = smul.u32 2, %s20
        %p184 = scmp.lt.s32.totalorder %s19, 1
        %s185 = scalar_select %p184, %s19, 1
        %p186 = scmp.lt.s32.totalorder %s183, 1
        %s187 = scalar_select %p186, %s183, 1
        %s188 = smul.addr %s185, 4
        %s189 = sadd.s32 %s187, %s188
        %s190 = smul.addr %s189, 8
        %s191 = scalar_lea.vmem %s0, %s190
        %p192 = pneg %p56
        %p193 = pneg %p53
        %p194 = scmp.lt.s32.totalorder %s21, 1
        %s195 = scalar_select %p194, %s21, 1
        %s196 = smul.addr %s195, 2
        %s197 = smul.addr %s196, 4
        %s198 = scalar_lea.vmem %s1, %s197
        %p199 = pneg %p82
        %p200 = pneg %p79
        %p201 = pneg %p103
        %p202 = pneg %p100
        %p203 = pneg %p133
        %p204 = pneg %p130
        %s205 = sand.u32 %s120, 1
        %s206 = sand.u32 %s120, 1
        %s207 = smul.addr %s206, 128
        %s208 = scalar_lea.vmem [#allocation2], %s207
        %s209 = smul.u32 2, %s20
        %p210 = scmp.lt.s32.totalorder %s19, 1
        %s211 = scalar_select %p210, %s19, 1
        %p212 = scmp.lt.s32.totalorder %s209, 1
        %s213 = scalar_select %p212, %s209, 1
        %s214 = smul.addr %s211, 4
        %s215 = sadd.s32 %s213, %s214
        %s216 = smul.addr %s215, 8
        %s217 = scalar_lea.vmem %s0, %s216
        %s218 = smul.u32 2, %s20
        %p219 = scmp.lt.s32.totalorder %s21, 1
        %s220 = scalar_select %p219, %s21, 1
        %s221 = smul.addr %s220, 2
        %s222 = smul.addr %s221, 4
        %s223 = scalar_lea.vmem %s1, %s222
        %s224 = smul.u32 16, %s20
        %v226 = vld [vmem:[%s217] sm:$0xff]
        %v227 = vld [vmem:[%s217 + $0x8] sm:$0xff]
        %v228 = vld [vmem:[%s217 + $0x10] sm:$0xff]
        %v229 = vld [vmem:[%s217 + $0x18] sm:$0xff]
        %v230 = vpack.c.bf16 %v228, %v226
        %v231 = vpack.c.bf16 %v229, %v227
        %v232 = vld [vmem:[%s223] sm:$0xf]
        %v233 = vld [vmem:[%s223 + $0x4] sm:$0xf]
        %v234 = vld [vmem:[%s2] sm:$0x1]
        %v236 = vperm.slane %v234, 0
        %238 = vxpose.binary.xlu0.c.b16.start [1/16] %v231, %v230, 128
        %239 = vxpose.binary.xlu0.c.b16.cont [2/16] 0, 0, 128
        %240 = vxpose.binary.xlu0.c.b16.cont [3/16] 0, 0, 128
        %241 = vxpose.binary.xlu0.c.b16.cont [4/16] 0, 0, 128
        %242 = vxpose.binary.xlu0.c.b16.cont [5/16] 0, 0, 128
        %243 = vxpose.binary.xlu0.c.b16.cont [6/16] 0, 0, 128
        %244 = vxpose.binary.xlu0.c.b16.cont [7/16] 0, 0, 128
        %245 = vxpose.binary.xlu0.c.b16.end [8/16] 0, 0, 128
        %v246 = vpop.trf.xlu0
        %v247 = vpop.trf.xlu0
        %v248 = vpop.trf.xlu0
        %v249 = vpop.trf.xlu0
        %v250 = vpop.trf.xlu0
        %v251 = vpop.trf.xlu0
        %v252 = vpop.trf.xlu0
        %v253 = vpop.trf.xlu0
        %v254 = vpop.trf.xlu0
        %v255 = vpop.trf.xlu0
        %v256 = vpop.trf.xlu0
        %v257 = vpop.trf.xlu0
        %v258 = vpop.trf.xlu0
        %v259 = vpop.trf.xlu0
        %v260 = vpop.trf.xlu0
        %v261 = vpop.trf.xlu0
        %v264 = vunpack.c.l.b16 %v232
        %v265 = vunpack.c.l.b16 %v233
        %v266 = vpack.c.b16 %v265, %v264
        %vm268 = vcmask 130048
        %v270 = vsel %vm268, %v246, 0
        %v273 = vsel %vm268, %v248, 0
        %v276 = vsel %vm268, %v250, 0
        %v279 = vsel %vm268, %v252, 0
        %v282 = vsel %vm268, %v254, 0
        %v285 = vsel %vm268, %v256, 0
        %v288 = vsel %vm268, %v258, 0
        %v291 = vsel %vm268, %v260, 0
        %v294 = vsel %vm268, %v247, 0
        %v297 = vsel %vm268, %v249, 0
        %v300 = vsel %vm268, %v251, 0
        %v303 = vsel %vm268, %v253, 0
        %v306 = vsel %vm268, %v255, 0
        %v309 = vsel %vm268, %v257, 0
        %v312 = vsel %vm268, %v259, 0
        %v315 = vsel %vm268, %v261, 0
        %317 = vmatpush.bf16.msra.mxu0 0
        %318 = vmatpush.bf16.msra.mxu0 0
        %319 = vmatpush.bf16.msra.mxu0 0
        %320 = vmatpush.bf16.msra.mxu0 0
        %321 = vmatpush.bf16.msra.mxu0 0
        %322 = vmatpush.bf16.msra.mxu0 0
        %323 = vmatpush.bf16.msra.mxu0 0
        %324 = vmatpush.bf16.msra.mxu0 %v266
        %325 = vmatmul.bf16.gmra.mxu0 %v270
        %v326 = vpop.f32.mrf.mxu0
        %v327 = vadd.f32 %v236, %v326
        %v328 = vpop.f32.mrf.mxu0
        %v329 = vadd.f32 %v236, %v328
        %330 = vmatmul.bf16.gmra.mxu0 %v273
        %v331 = vpop.f32.mrf.mxu0
        %v332 = vadd.f32 %v236, %v331
        %v333 = vpop.f32.mrf.mxu0
        %v334 = vadd.f32 %v236, %v333
        %335 = vmatmul.bf16.gmra.mxu0 %v276
        %v336 = vpop.f32.mrf.mxu0
        %v337 = vadd.f32 %v236, %v336
        %v338 = vpop.f32.mrf.mxu0
        %v339 = vadd.f32 %v236, %v338
        %340 = vmatmul.bf16.gmra.mxu0 %v279
        %v341 = vpop.f32.mrf.mxu0
        %v342 = vadd.f32 %v236, %v341
        %v343 = vpop.f32.mrf.mxu0
        %v344 = vadd.f32 %v236, %v343
        %345 = vmatmul.bf16.gmra.mxu0 %v282
        %v346 = vpop.f32.mrf.mxu0
        %v347 = vadd.f32 %v236, %v346
        %v348 = vpop.f32.mrf.mxu0
        %v349 = vadd.f32 %v236, %v348
        %350 = vmatmul.bf16.gmra.mxu0 %v285
        %v351 = vpop.f32.mrf.mxu0
        %v352 = vadd.f32 %v236, %v351
        %v353 = vpop.f32.mrf.mxu0
        %v354 = vadd.f32 %v236, %v353
        %355 = vmatmul.bf16.gmra.mxu0 %v288
        %v356 = vpop.f32.mrf.mxu0
        %v357 = vadd.f32 %v236, %v356
        %v358 = vpop.f32.mrf.mxu0
        %v359 = vadd.f32 %v236, %v358
        %360 = vmatmul.bf16.gmra.mxu0 %v291
        %v361 = vpop.f32.mrf.mxu0
        %v362 = vadd.f32 %v236, %v361
        %v363 = vpop.f32.mrf.mxu0
        %v364 = vadd.f32 %v236, %v363
        %365 = vmatmul.bf16.gmra.mxu0 %v294
        %v366 = vpop.f32.mrf.mxu0
        %v367 = vadd.f32 %v236, %v366
        %v368 = vpop.f32.mrf.mxu0
        %v369 = vadd.f32 %v236, %v368
        %370 = vmatmul.bf16.gmra.mxu0 %v297
        %v371 = vpop.f32.mrf.mxu0
        %v372 = vadd.f32 %v236, %v371
        %v373 = vpop.f32.mrf.mxu0
        %v374 = vadd.f32 %v236, %v373
        %375 = vmatmul.bf16.gmra.mxu0 %v300
        %v376 = vpop.f32.mrf.mxu0
        %v377 = vadd.f32 %v236, %v376
        %v378 = vpop.f32.mrf.mxu0
        %v379 = vadd.f32 %v236, %v378
        %380 = vmatmul.bf16.gmra.mxu0 %v303
        %v381 = vpop.f32.mrf.mxu0
        %v382 = vadd.f32 %v236, %v381
        %v383 = vpop.f32.mrf.mxu0
        %v384 = vadd.f32 %v236, %v383
        %385 = vmatmul.bf16.gmra.mxu0 %v306
        %v386 = vpop.f32.mrf.mxu0
        %v387 = vadd.f32 %v236, %v386
        %v388 = vpop.f32.mrf.mxu0
        %v389 = vadd.f32 %v236, %v388
        %390 = vmatmul.bf16.gmra.mxu0 %v309
        %v391 = vpop.f32.mrf.mxu0
        %v392 = vadd.f32 %v236, %v391
        %v393 = vpop.f32.mrf.mxu0
        %v394 = vadd.f32 %v236, %v393
        %395 = vmatmul.bf16.gmra.mxu0 %v312
        %v396 = vpop.f32.mrf.mxu0
        %v397 = vadd.f32 %v236, %v396
        %v398 = vpop.f32.mrf.mxu0
        %v399 = vadd.f32 %v236, %v398
        %400 = vmatmul.bf16.gmra.mxu0 %v315
        %v401 = vpop.f32.mrf.mxu0
        %v402 = vadd.f32 %v236, %v401
        %v403 = vpop.f32.mrf.mxu0
        %v404 = vadd.f32 %v236, %v403
        %405 = vdwg.mxu0
        %v406 = vsub.f32 0.0, %v327
        %v407 = vsub.f32 0.0, %v329
        %v408 = vsub.f32 0.0, %v332
        %v409 = vsub.f32 0.0, %v334
        %v410 = vsub.f32 0.0, %v337
        %v411 = vsub.f32 0.0, %v339
        %v412 = vsub.f32 0.0, %v342
        %v413 = vsub.f32 0.0, %v344
        %v414 = vsub.f32 0.0, %v347
        %v415 = vsub.f32 0.0, %v349
        %v416 = vsub.f32 0.0, %v352
        %v417 = vsub.f32 0.0, %v354
        %v418 = vsub.f32 0.0, %v357
        %v419 = vsub.f32 0.0, %v359
        %v420 = vsub.f32 0.0, %v362
        %v421 = vsub.f32 0.0, %v364
        %v422 = vsub.f32 0.0, %v367
        %v423 = vsub.f32 0.0, %v369
        %v424 = vsub.f32 0.0, %v372
        %v425 = vsub.f32 0.0, %v374
        %v426 = vsub.f32 0.0, %v377
        %v427 = vsub.f32 0.0, %v379
        %v428 = vsub.f32 0.0, %v382
        %v429 = vsub.f32 0.0, %v384
        %v430 = vsub.f32 0.0, %v387
        %v431 = vsub.f32 0.0, %v389
        %v432 = vsub.f32 0.0, %v392
        %v433 = vsub.f32 0.0, %v394
        %v434 = vsub.f32 0.0, %v397
        %v435 = vsub.f32 0.0, %v399
        %v436 = vsub.f32 0.0, %v402
        %v437 = vsub.f32 0.0, %v404
        %v438 = vmul.f32 %v406, 1.442695
        %v439 = vpow.pop %v438
        %v440 = vmul.f32 %v407, 1.442695
        %v441 = vpow.pop %v440
        %v442 = vmul.f32 %v408, 1.442695
        %v443 = vpow.pop %v442
        %v444 = vmul.f32 %v409, 1.442695
        %v445 = vpow.pop %v444
        %v446 = vmul.f32 %v410, 1.442695
        %v447 = vpow.pop %v446
        %v448 = vmul.f32 %v411, 1.442695
        %v449 = vpow.pop %v448
        %v450 = vmul.f32 %v412, 1.442695
        %v451 = vpow.pop %v450
        %v452 = vmul.f32 %v413, 1.442695
        %v453 = vpow.pop %v452
        %v454 = vmul.f32 %v414, 1.442695
        %v455 = vpow.pop %v454
        %v456 = vmul.f32 %v415, 1.442695
        %v457 = vpow.pop %v456
        %v458 = vmul.f32 %v416, 1.442695
        %v459 = vpow.pop %v458
        %v460 = vmul.f32 %v417, 1.442695
        %v461 = vpow.pop %v460
        %v462 = vmul.f32 %v418, 1.442695
        %v463 = vpow.pop %v462
        %v464 = vmul.f32 %v419, 1.442695
        %v465 = vpow.pop %v464
        %v466 = vmul.f32 %v420, 1.442695
        %v467 = vpow.pop %v466
        %v468 = vmul.f32 %v421, 1.442695
        %v469 = vpow.pop %v468
        %v470 = vmul.f32 %v422, 1.442695
        %v471 = vpow.pop %v470
        %v472 = vmul.f32 %v423, 1.442695
        %v473 = vpow.pop %v472
        %v474 = vmul.f32 %v424, 1.442695
        %v475 = vpow.pop %v474
        %v476 = vmul.f32 %v425, 1.442695
        %v477 = vpow.pop %v476
        %v478 = vmul.f32 %v426, 1.442695
        %v479 = vpow.pop %v478
        %v480 = vmul.f32 %v427, 1.442695
        %v481 = vpow.pop %v480
        %v482 = vmul.f32 %v428, 1.442695
        %v483 = vpow.pop %v482
        %v484 = vmul.f32 %v429, 1.442695
        %v485 = vpow.pop %v484
        %v486 = vmul.f32 %v430, 1.442695
        %v487 = vpow.pop %v486
        %v488 = vmul.f32 %v431, 1.442695
        %v489 = vpow.pop %v488
        %v490 = vmul.f32 %v432, 1.442695
        %v491 = vpow.pop %v490
        %v492 = vmul.f32 %v433, 1.442695
        %v493 = vpow.pop %v492
        %v494 = vmul.f32 %v434, 1.442695
        %v495 = vpow.pop %v494
        %v496 = vmul.f32 %v435, 1.442695
        %v497 = vpow.pop %v496
        %v498 = vmul.f32 %v436, 1.442695
        %v499 = vpow.pop %v498
        %v500 = vmul.f32 %v437, 1.442695
        %v501 = vpow.pop %v500
        %v502 = vadd.f32 %v439, 1.0
        %v503 = vadd.f32 %v441, 1.0
        %v504 = vadd.f32 %v443, 1.0
        %v505 = vadd.f32 %v445, 1.0
        %v506 = vadd.f32 %v447, 1.0
        %v507 = vadd.f32 %v449, 1.0
        %v508 = vadd.f32 %v451, 1.0
        %v509 = vadd.f32 %v453, 1.0
        %v510 = vadd.f32 %v455, 1.0
        %v511 = vadd.f32 %v457, 1.0
        %v512 = vadd.f32 %v459, 1.0
        %v513 = vadd.f32 %v461, 1.0
        %v514 = vadd.f32 %v463, 1.0
        %v515 = vadd.f32 %v465, 1.0
        %v516 = vadd.f32 %v467, 1.0
        %v517 = vadd.f32 %v469, 1.0
        %v518 = vadd.f32 %v471, 1.0
        %v519 = vadd.f32 %v473, 1.0
        %v520 = vadd.f32 %v475, 1.0
        %v521 = vadd.f32 %v477, 1.0
        %v522 = vadd.f32 %v479, 1.0
        %v523 = vadd.f32 %v481, 1.0
        %v524 = vadd.f32 %v483, 1.0
        %v525 = vadd.f32 %v485, 1.0
        %v526 = vadd.f32 %v487, 1.0
        %v527 = vadd.f32 %v489, 1.0
        %v528 = vadd.f32 %v491, 1.0
        %v529 = vadd.f32 %v493, 1.0
        %v530 = vadd.f32 %v495, 1.0
        %v531 = vadd.f32 %v497, 1.0
        %v532 = vadd.f32 %v499, 1.0
        %v533 = vadd.f32 %v501, 1.0
        %v534 = vrcp.pop %v502
        %v535 = vrcp.pop %v503
        %v536 = vrcp.pop %v504
        %v537 = vrcp.pop %v505
        %v538 = vrcp.pop %v506
        %v539 = vrcp.pop %v507
        %v540 = vrcp.pop %v508
        %v541 = vrcp.pop %v509
        %v542 = vrcp.pop %v510
        %v543 = vrcp.pop %v511
        %v544 = vrcp.pop %v512
        %v545 = vrcp.pop %v513
        %v546 = vrcp.pop %v514
        %v547 = vrcp.pop %v515
        %v548 = vrcp.pop %v516
        %v549 = vrcp.pop %v517
        %v550 = vrcp.pop %v518
        %v551 = vrcp.pop %v519
        %v552 = vrcp.pop %v520
        %v553 = vrcp.pop %v521
        %v554 = vrcp.pop %v522
        %v555 = vrcp.pop %v523
        %v556 = vrcp.pop %v524
        %v557 = vrcp.pop %v525
        %v558 = vrcp.pop %v526
        %v559 = vrcp.pop %v527
        %v560 = vrcp.pop %v528
        %v561 = vrcp.pop %v529
        %v562 = vrcp.pop %v530
        %v563 = vrcp.pop %v531
        %v564 = vrcp.pop %v532
        %v565 = vrcp.pop %v533
        %v566 = vmul.f32 %v327, %v534
        %v567 = vmul.f32 %v329, %v535
        %v568 = vmul.f32 %v332, %v536
        %v569 = vmul.f32 %v334, %v537
        %v570 = vmul.f32 %v337, %v538
        %v571 = vmul.f32 %v339, %v539
        %v572 = vmul.f32 %v342, %v540
        %v573 = vmul.f32 %v344, %v541
        %v574 = vmul.f32 %v347, %v542
        %v575 = vmul.f32 %v349, %v543
        %v576 = vmul.f32 %v352, %v544
        %v577 = vmul.f32 %v354, %v545
        %v578 = vmul.f32 %v357, %v546
        %v579 = vmul.f32 %v359, %v547
        %v580 = vmul.f32 %v362, %v548
        %v581 = vmul.f32 %v364, %v549
        %v582 = vmul.f32 %v367, %v550
        %v583 = vmul.f32 %v369, %v551
        %v584 = vmul.f32 %v372, %v552
        %v585 = vmul.f32 %v374, %v553
        %v586 = vmul.f32 %v377, %v554
        %v587 = vmul.f32 %v379, %v555
        %v588 = vmul.f32 %v382, %v556
        %v589 = vmul.f32 %v384, %v557
        %v590 = vmul.f32 %v387, %v558
        %v591 = vmul.f32 %v389, %v559
        %v592 = vmul.f32 %v392, %v560
        %v593 = vmul.f32 %v394, %v561
        %v594 = vmul.f32 %v397, %v562
        %v595 = vmul.f32 %v399, %v563
        %v596 = vmul.f32 %v402, %v564
        %v597 = vmul.f32 %v404, %v565
        %v598 = vpack.c.bf16 %v566, %v566
        %v599 = vpack.c.bf16 %v567, %v567
        %v600 = vpack.c.bf16 %v568, %v568
        %v601 = vpack.c.bf16 %v569, %v569
        %v602 = vpack.c.bf16 %v570, %v570
        %v603 = vpack.c.bf16 %v571, %v571
        %v604 = vpack.c.bf16 %v572, %v572
        %v605 = vpack.c.bf16 %v573, %v573
        %v606 = vpack.c.bf16 %v574, %v574
        %v607 = vpack.c.bf16 %v575, %v575
        %v608 = vpack.c.bf16 %v576, %v576
        %v609 = vpack.c.bf16 %v577, %v577
        %v610 = vpack.c.bf16 %v578, %v578
        %v611 = vpack.c.bf16 %v579, %v579
        %v612 = vpack.c.bf16 %v580, %v580
        %v613 = vpack.c.bf16 %v581, %v581
        %v614 = vpack.c.bf16 %v582, %v582
        %v615 = vpack.c.bf16 %v583, %v583
        %v616 = vpack.c.bf16 %v584, %v584
        %v617 = vpack.c.bf16 %v585, %v585
        %v618 = vpack.c.bf16 %v586, %v586
        %v619 = vpack.c.bf16 %v587, %v587
        %v620 = vpack.c.bf16 %v588, %v588
        %v621 = vpack.c.bf16 %v589, %v589
        %v622 = vpack.c.bf16 %v590, %v590
        %v623 = vpack.c.bf16 %v591, %v591
        %v624 = vpack.c.bf16 %v592, %v592
        %v625 = vpack.c.bf16 %v593, %v593
        %v626 = vpack.c.bf16 %v594, %v594
        %v627 = vpack.c.bf16 %v595, %v595
        %v628 = vpack.c.bf16 %v596, %v596
        %v629 = vpack.c.bf16 %v597, %v597
        %630 = vst [vmem:[%s208] sm:$0xf] %v598
        %631 = vst [vmem:[%s208 + $0x4] sm:$0xf] %v599
        %632 = vst [vmem:[%s208 + $0x8] sm:$0xf] %v600
        %633 = vst [vmem:[%s208 + $0xc] sm:$0xf] %v601
        %634 = vst [vmem:[%s208 + $0x10] sm:$0xf] %v602
        %635 = vst [vmem:[%s208 + $0x14] sm:$0xf] %v603
        %636 = vst [vmem:[%s208 + $0x18] sm:$0xf] %v604
        %637 = vst [vmem:[%s208 + $0x1c] sm:$0xf] %v605
        %638 = vst [vmem:[%s208 + $0x20] sm:$0xf] %v606
        %639 = vst [vmem:[%s208 + $0x24] sm:$0xf] %v607
        %640 = vst [vmem:[%s208 + $0x28] sm:$0xf] %v608
        %641 = vst [vmem:[%s208 + $0x2c] sm:$0xf] %v609
        %642 = vst [vmem:[%s208 + $0x30] sm:$0xf] %v610
        %643 = vst [vmem:[%s208 + $0x34] sm:$0xf] %v611
        %644 = vst [vmem:[%s208 + $0x38] sm:$0xf] %v612
        %645 = vst [vmem:[%s208 + $0x3c] sm:$0xf] %v613
        %646 = vst [vmem:[%s208 + $0x40] sm:$0xf] %v614
        %647 = vst [vmem:[%s208 + $0x44] sm:$0xf] %v615
        %648 = vst [vmem:[%s208 + $0x48] sm:$0xf] %v616
        %649 = vst [vmem:[%s208 + $0x4c] sm:$0xf] %v617
        %650 = vst [vmem:[%s208 + $0x50] sm:$0xf] %v618
        %651 = vst [vmem:[%s208 + $0x54] sm:$0xf] %v619
        %652 = vst [vmem:[%s208 + $0x58] sm:$0xf] %v620
        %653 = vst [vmem:[%s208 + $0x5c] sm:$0xf] %v621
        %654 = vst [vmem:[%s208 + $0x60] sm:$0xf] %v622
        %655 = vst [vmem:[%s208 + $0x64] sm:$0xf] %v623
        %656 = vst [vmem:[%s208 + $0x68] sm:$0xf] %v624
        %657 = vst [vmem:[%s208 + $0x6c] sm:$0xf] %v625
        %658 = vst [vmem:[%s208 + $0x70] sm:$0xf] %v626
        %659 = vst [vmem:[%s208 + $0x74] sm:$0xf] %v627
        %660 = vst [vmem:[%s208 + $0x78] sm:$0xf] %v628
        %661 = vst [vmem:[%s208 + $0x7c] sm:$0xf] %v629
        %s662 = sand.u32 %s120, 1
        %s663 = sand.u32 %s120, 1
        %s664 = smul.addr %s663, 128
        %s665 = scalar_lea.vmem [#allocation2], %s664
        // Predicated region
        $region33: #{ctba_forward.1} parent=31 // pred_check
          %p666 = pneg %p130
        $region34: #{ctba_forward.1} parent=31 // pred_check_branch
          %668 = sbr.rel (%p666) target = $region36
        $region35: #{ctba_forward.1} parent=31 // pred_region
          %s669 = smul.u32 16, %s20
          %s670 = smul.addr %s21, 2
          %s671 = smul.addr %s669, 4
          %s672 = sadd.s32 %s670, %s671
          %s673 = smul.addr %s19, 64
          %s674 = sadd.s32 %s672, %s673
          %s675 = smul.addr %s674, 4
          %s676 = scalar_lea.vmem %s3, %s675
          // Predicated region
          $region37: #{ctba_forward.1} parent=35 // pred_check
            _
          $region38: #{ctba_forward.1} parent=35 // pred_check_branch
            %678 = sbr.rel (0) target = $region40
          $region39: #{ctba_forward.1} parent=35 // pred_region
            // Predicated region
            $region41: #{ctba_forward.1} parent=39 // pred_check
              _
            $region42: #{ctba_forward.1} parent=39 // pred_check_branch
              %680 = sbr.rel target = $region44
            $region43: #{ctba_forward.1} parent=39 // pred_region
              // Predicated region
              $region56: #{ctba_forward.1} parent=43 // pred_check
                _
              $region57: #{ctba_forward.1} parent=43 // pred_check_branch
                %758 = sbr.rel (0) target = $region59
              $region58: #{ctba_forward.1} parent=43 // pred_region
                loop: start=0, step=1, limit=1
                $region60: #{ctba_forward.1} parent=58 // loop_pre_header
                  _
                $region61: #{ctba_forward.1} parent=58 // loop_header
                  %s760 = sphi 0, %s764
                  %p761 = scmp.ge.s32.totalorder %s760, 1
                  %s765 = sphi %s665, %s665
                  %s766 = sphi %s676, %s676
                $region62: #{ctba_forward.1} parent=58 // loop_header_branch
                  %763 = sbr.rel (%p761) target = $region66
                $region63: #{ctba_forward.1} parent=58 // loop_body
                  _
                $region64: #{ctba_forward.1} parent=58 // loop_footer
                  %s764 = sadd.s32 1, %s760
                $region65: #{ctba_forward.1} parent=58 // loop_footer_branch
                  %759 = sbr.rel target = $region61
                $region66: #{ctba_forward.1} parent=58 // loop_exit
                  _
                %s768 = ssub.s32 16, 1
                loop: start=0, step=1, limit=1
                $region67: #{ctba_forward.1} parent=58 // loop_pre_header
                  _
                $region68: #{ctba_forward.1} parent=58 // loop_header
                  %s770 = sphi 0, %s774
                  %p771 = scmp.ge.s32.totalorder %s770, 1
                  %s775 = sphi %s665, %s665
                  %s776 = sphi %s676, %s676
                $region69: #{ctba_forward.1} parent=58 // loop_header_branch
                  %773 = sbr.rel (%p771) target = $region73
                $region70: #{ctba_forward.1} parent=58 // loop_body
                  %v777 = vld [vmem:[%s775] sm:%s768]
                  %778 = vst [vmem:[%s776] sm:%s768] %v777
                  %v779 = vld [vmem:[%s775 + $0x4] sm:%s768]
                  %780 = vst [vmem:[%s776 + $0x4] sm:%s768] %v779
                  %v781 = vld [vmem:[%s775 + $0x8] sm:%s768]
                  %782 = vst [vmem:[%s776 + $0x10] sm:%s768] %v781
                  %v783 = vld [vmem:[%s775 + $0xc] sm:%s768]
                  %784 = vst [vmem:[%s776 + $0x14] sm:%s768] %v783
                  %v785 = vld [vmem:[%s775 + $0x10] sm:%s768]
                  %786 = vst [vmem:[%s776 + $0x20] sm:%s768] %v785
                  %v787 = vld [vmem:[%s775 + $0x14] sm:%s768]
                  %788 = vst [vmem:[%s776 + $0x24] sm:%s768] %v787
                  %v789 = vld [vmem:[%s775 + $0x18] sm:%s768]
                  %790 = vst [vmem:[%s776 + $0x30] sm:%s768] %v789
                  %v791 = vld [vmem:[%s775 + $0x1c] sm:%s768]
                  %792 = vst [vmem:[%s776 + $0x34] sm:%s768] %v791
                  %v793 = vld [vmem:[%s775 + $0x20] sm:%s768]
                  %794 = vst [vmem:[%s776 + $0x40] sm:%s768] %v793
                  %v795 = vld [vmem:[%s775 + $0x24] sm:%s768]
                  %796 = vst [vmem:[%s776 + $0x44] sm:%s768] %v795
                  %v797 = vld [vmem:[%s775 + $0x28] sm:%s768]
                  %798 = vst [vmem:[%s776 + $0x50] sm:%s768] %v797
                  %v799 = vld [vmem:[%s775 + $0x2c] sm:%s768]
                  %800 = vst [vmem:[%s776 + $0x54] sm:%s768] %v799
                  %v801 = vld [vmem:[%s775 + $0x30] sm:%s768]
                  %802 = vst [vmem:[%s776 + $0x60] sm:%s768] %v801
                  %v803 = vld [vmem:[%s775 + $0x34] sm:%s768]
                  %804 = vst [vmem:[%s776 + $0x64] sm:%s768] %v803
                  %v805 = vld [vmem:[%s775 + $0x38] sm:%s768]
                  %806 = vst [vmem:[%s776 + $0x70] sm:%s768] %v805
                  %v807 = vld [vmem:[%s775 + $0x3c] sm:%s768]
                  %808 = vst [vmem:[%s776 + $0x74] sm:%s768] %v807
                  %v809 = vld [vmem:[%s775 + $0x40] sm:%s768]
                  %810 = vst [vmem:[%s776 + $0x80] sm:%s768] %v809
                  %v811 = vld [vmem:[%s775 + $0x44] sm:%s768]
                  %812 = vst [vmem:[%s776 + $0x84] sm:%s768] %v811
                  %v813 = vld [vmem:[%s775 + $0x48] sm:%s768]
                  %814 = vst [vmem:[%s776 + $0x90] sm:%s768] %v813
                  %v815 = vld [vmem:[%s775 + $0x4c] sm:%s768]
                  %816 = vst [vmem:[%s776 + $0x94] sm:%s768] %v815
                  %v817 = vld [vmem:[%s775 + $0x50] sm:%s768]
                  %818 = vst [vmem:[%s776 + $0xa0] sm:%s768] %v817
                  %v819 = vld [vmem:[%s775 + $0x54] sm:%s768]
                  %820 = vst [vmem:[%s776 + $0xa4] sm:%s768] %v819
                  %v821 = vld [vmem:[%s775 + $0x58] sm:%s768]
                  %822 = vst [vmem:[%s776 + $0xb0] sm:%s768] %v821
                  %v823 = vld [vmem:[%s775 + $0x5c] sm:%s768]
                  %824 = vst [vmem:[%s776 + $0xb4] sm:%s768] %v823
                  %v825 = vld [vmem:[%s775 + $0x60] sm:%s768]
                  %826 = vst [vmem:[%s776 + $0xc0] sm:%s768] %v825
                  %v827 = vld [vmem:[%s775 + $0x64] sm:%s768]
                  %828 = vst [vmem:[%s776 + $0xc4] sm:%s768] %v827
                  %v829 = vld [vmem:[%s775 + $0x68] sm:%s768]
                  %830 = vst [vmem:[%s776 + $0xd0] sm:%s768] %v829
                  %v831 = vld [vmem:[%s775 + $0x6c] sm:%s768]
                  %832 = vst [vmem:[%s776 + $0xd4] sm:%s768] %v831
                  %v833 = vld [vmem:[%s775 + $0x70] sm:%s768]
                  %834 = vst [vmem:[%s776 + $0xe0] sm:%s768] %v833
                  %v835 = vld [vmem:[%s775 + $0x74] sm:%s768]
                  %836 = vst [vmem:[%s776 + $0xe4] sm:%s768] %v835
                  %v837 = vld [vmem:[%s775 + $0x78] sm:%s768]
                  %838 = vst [vmem:[%s776 + $0xf0] sm:%s768] %v837
                  %v839 = vld [vmem:[%s775 + $0x7c] sm:%s768]
                  %840 = vst [vmem:[%s776 + $0xf4] sm:%s768] %v839
                $region71: #{ctba_forward.1} parent=58 // loop_footer
                  %s774 = sadd.s32 1, %s770
                $region72: #{ctba_forward.1} parent=58 // loop_footer_branch
                  %769 = sbr.rel target = $region68
                $region73: #{ctba_forward.1} parent=58 // loop_exit
                  _
              $region59: #{ctba_forward.1} parent=43 // pred_fallthru
                _
            $region44: #{ctba_forward.1} parent=39 // pred_fallthru
              _
            // Predicated region
            $region45: #{ctba_forward.1} parent=39 // pred_check
              _
            $region46: #{ctba_forward.1} parent=39 // pred_check_branch
              %682 = sbr.rel (0) target = $region48
            $region47: #{ctba_forward.1} parent=39 // pred_region
              %s684 = ssub.s32 16, 1
              loop: start=0, step=1, limit=1
              $region49: #{ctba_forward.1} parent=47 // loop_pre_header
                _
              $region50: #{ctba_forward.1} parent=47 // loop_header
                %s686 = sphi 0, %s690
                %p687 = scmp.ge.s32.totalorder %s686, 1
                %s691 = sphi %s665, %s665
                %s692 = sphi %s676, %s676
              $region51: #{ctba_forward.1} parent=47 // loop_header_branch
                %689 = sbr.rel (%p687) target = $region55
              $region52: #{ctba_forward.1} parent=47 // loop_body
                %v693 = vld [vmem:[%s691] sm:%s684]
                %694 = vst [vmem:[%s692] sm:%s684] %v693
                %v695 = vld [vmem:[%s691 + $0x4] sm:%s684]
                %696 = vst [vmem:[%s692 + $0x4] sm:%s684] %v695
                %v697 = vld [vmem:[%s691 + $0x8] sm:%s684]
                %698 = vst [vmem:[%s692 + $0x10] sm:%s684] %v697
                %v699 = vld [vmem:[%s691 + $0xc] sm:%s684]
                %700 = vst [vmem:[%s692 + $0x14] sm:%s684] %v699
                %v701 = vld [vmem:[%s691 + $0x10] sm:%s684]
                %702 = vst [vmem:[%s692 + $0x20] sm:%s684] %v701
                %v703 = vld [vmem:[%s691 + $0x14] sm:%s684]
                %704 = vst [vmem:[%s692 + $0x24] sm:%s684] %v703
                %v705 = vld [vmem:[%s691 + $0x18] sm:%s684]
                %706 = vst [vmem:[%s692 + $0x30] sm:%s684] %v705
                %v707 = vld [vmem:[%s691 + $0x1c] sm:%s684]
                %708 = vst [vmem:[%s692 + $0x34] sm:%s684] %v707
                %v709 = vld [vmem:[%s691 + $0x20] sm:%s684]
                %710 = vst [vmem:[%s692 + $0x40] sm:%s684] %v709
                %v711 = vld [vmem:[%s691 + $0x24] sm:%s684]
                %712 = vst [vmem:[%s692 + $0x44] sm:%s684] %v711
                %v713 = vld [vmem:[%s691 + $0x28] sm:%s684]
                %714 = vst [vmem:[%s692 + $0x50] sm:%s684] %v713
                %v715 = vld [vmem:[%s691 + $0x2c] sm:%s684]
                %716 = vst [vmem:[%s692 + $0x54] sm:%s684] %v715
                %v717 = vld [vmem:[%s691 + $0x30] sm:%s684]
                %718 = vst [vmem:[%s692 + $0x60] sm:%s684] %v717
                %v719 = vld [vmem:[%s691 + $0x34] sm:%s684]
                %720 = vst [vmem:[%s692 + $0x64] sm:%s684] %v719
                %v721 = vld [vmem:[%s691 + $0x38] sm:%s684]
                %722 = vst [vmem:[%s692 + $0x70] sm:%s684] %v721
                %v723 = vld [vmem:[%s691 + $0x3c] sm:%s684]
                %724 = vst [vmem:[%s692 + $0x74] sm:%s684] %v723
                %v725 = vld [vmem:[%s691 + $0x40] sm:%s684]
                %726 = vst [vmem:[%s692 + $0x80] sm:%s684] %v725
                %v727 = vld [vmem:[%s691 + $0x44] sm:%s684]
                %728 = vst [vmem:[%s692 + $0x84] sm:%s684] %v727
                %v729 = vld [vmem:[%s691 + $0x48] sm:%s684]
                %730 = vst [vmem:[%s692 + $0x90] sm:%s684] %v729
                %v731 = vld [vmem:[%s691 + $0x4c] sm:%s684]
                %732 = vst [vmem:[%s692 + $0x94] sm:%s684] %v731
                %v733 = vld [vmem:[%s691 + $0x50] sm:%s684]
                %734 = vst [vmem:[%s692 + $0xa0] sm:%s684] %v733
                %v735 = vld [vmem:[%s691 + $0x54] sm:%s684]
                %736 = vst [vmem:[%s692 + $0xa4] sm:%s684] %v735
                %v737 = vld [vmem:[%s691 + $0x58] sm:%s684]
                %738 = vst [vmem:[%s692 + $0xb0] sm:%s684] %v737
                %v739 = vld [vmem:[%s691 + $0x5c] sm:%s684]
                %740 = vst [vmem:[%s692 + $0xb4] sm:%s684] %v739
                %v741 = vld [vmem:[%s691 + $0x60] sm:%s684]
                %742 = vst [vmem:[%s692 + $0xc0] sm:%s684] %v741
                %v743 = vld [vmem:[%s691 + $0x64] sm:%s684]
                %744 = vst [vmem:[%s692 + $0xc4] sm:%s684] %v743
                %v745 = vld [vmem:[%s691 + $0x68] sm:%s684]
                %746 = vst [vmem:[%s692 + $0xd0] sm:%s684] %v745
                %v747 = vld [vmem:[%s691 + $0x6c] sm:%s684]
                %748 = vst [vmem:[%s692 + $0xd4] sm:%s684] %v747
                %v749 = vld [vmem:[%s691 + $0x70] sm:%s684]
                %750 = vst [vmem:[%s692 + $0xe0] sm:%s684] %v749
                %v751 = vld [vmem:[%s691 + $0x74] sm:%s684]
                %752 = vst [vmem:[%s692 + $0xe4] sm:%s684] %v751
                %v753 = vld [vmem:[%s691 + $0x78] sm:%s684]
                %754 = vst [vmem:[%s692 + $0xf0] sm:%s684] %v753
                %v755 = vld [vmem:[%s691 + $0x7c] sm:%s684]
                %756 = vst [vmem:[%s692 + $0xf4] sm:%s684] %v755
              $region53: #{ctba_forward.1} parent=47 // loop_footer
                %s690 = sadd.s32 1, %s686
              $region54: #{ctba_forward.1} parent=47 // loop_footer_branch
                %685 = sbr.rel target = $region50
              $region55: #{ctba_forward.1} parent=47 // loop_exit
                _
            $region48: #{ctba_forward.1} parent=39 // pred_fallthru
              _
          $region40: #{ctba_forward.1} parent=35 // pred_fallthru
            _
          %841 = vnop
        $region36: #{ctba_forward.1} parent=31 // pred_fallthru
          _
      $region32: #{ctba_forward.1} parent=5 // pred_fallthru
        _
      %p842 = scmp.le.s32.totalorder 2, %s9
      // Predicated region
      $region74: #{ctba_forward.1} parent=5 // pred_check
        %p843 = pneg %p842
      $region75: #{ctba_forward.1} parent=5 // pred_check_branch
        %845 = sbr.rel (%p843) target = $region77
      $region76: #{ctba_forward.1} parent=5 // pred_region
        %s846 = ssub.s32 %s9, 2
        // Predicated region
        $region78: #{ctba_forward.1} parent=76 // pred_check
          %p847 = pneg %p136
        $region79: #{ctba_forward.1} parent=76 // pred_check_branch
          %849 = sbr.rel (%p847) target = $region81
        $region80: #{ctba_forward.1} parent=76 // pred_region
          %s850 = sand.u32 %s121, 1
          %s851 = sand.u32 %s121, 1
          %s852 = smul.addr %s851, 128
          %s853 = scalar_lea.vmem [#allocation2], %s852
        $region81: #{ctba_forward.1} parent=76 // pred_fallthru
          _
      $region77: #{ctba_forward.1} parent=5 // pred_fallthru
        _
    $region6: #{ctba_forward.1} parent=1 // loop_footer
      %s13 = sadd.s32 1, %s9
    $region7: #{ctba_forward.1} parent=1 // loop_footer_branch
      %8 = sbr.rel target = $region3
    $region8: #{ctba_forward.1} parent=1 // loop_exit
      _

</llo_original>
